<compile_context>
chip_gen: v7x
topology: tpu7x:2x2x1
jax: 0.10.0
libtpu: 0.0.40
codegen_flags: <defaults>
</compile_context>

<pallas_src>
import jax
import jax.numpy as jnp
from jax.experimental import pallas as pl
from jax.experimental.pallas import tpu as pltpu


def _make_l_smooth_kernel(C, Cs, L, W, n_img, TL):
    """Kernel body for one packed group of `n_img` images.

    Refs:
      mask_ref: (2, L) f32       row 0 = h-direction validity, row 1 = w-dir.
      x_ref:    (n_img*C,  L)    packed image channels (native dtype).
      seg_ref:  (n_img*Cs, L)    packed seg-map channels (native dtype).
      out_ref:  (1, 1, TL) f32   lane-folded partial, summed over the group.
    """

    def kernel(mask_ref, x_ref, seg_ref, out_ref):
        masks = mask_ref[...]
        h_mask = masks[0:1]                      # (1, L)
        w_mask = masks[1:2]                      # (1, L)

        x = x_ref[...].astype(jnp.float32)       # (n_img*C,  L)
        seg = seg_ref[...].astype(jnp.float32)   # (n_img*Cs, L)

        # Channel softmax per image.  Subtracting one shared per-lane max
        # (constant across every image's channel rows) keeps each per-image
        # softmax exact while the exp runs on the packed block.
        m = jnp.max(seg, axis=0, keepdims=True)
        e = jnp.exp(seg - m)                     # (n_img*Cs, L)
        seg_sm = []
        for i in range(n_img):
            ei = e[i * Cs:(i + 1) * Cs]
            inv = pl.reciprocal(jnp.sum(ei, axis=0, keepdims=True), approx=False)
            seg_sm.append(ei * inv)              # (Cs, L)

        def dir_total(step):
            # Forward neighbour a[(p + step) % L] via lane rotation
            # (jnp.roll convention: roll(a, s)[p] == a[(p - s) % L]).
            xr = pltpu.roll(x, shift=L - step, axis=1)
            dx = xr - x
            dx2 = dx * dx                        # (n_img*C, L), full sublanes
            tot = None
            for i in range(n_img):
                tv = jnp.mean(dx2[i * C:(i + 1) * C], axis=0, keepdims=True)
                si = seg_sm[i]
                ds = pltpu.roll(si, shift=L - step, axis=1) - si
                stv = jnp.mean(ds * ds, axis=0, keepdims=True)
                term = tv * jnp.exp(-stv)        # (1, L)
                tot = term if tot is None else tot + term
            return tot                           # (1, L), summed over images

        # One direction at a time (down, then right) to cap live temporaries.
        total = dir_total(W) * h_mask + dir_total(1) * w_mask   # (1, L)

        # Fold lanes down to a small lane-dense partial (static aligned
        # 128-lane slices) instead of writing 4 B/pixel back to HBM.
        acc = total[:, 0:TL]
        for k in range(1, L // TL):
            acc = acc + total[:, k * TL:(k + 1) * TL]
        out_ref[0] = acc

    return kernel


def l_smooth(x, seg_map):
    B, C, H, W = x.shape
    Bs, Cs, Hs, Ws = seg_map.shape
    assert (B, H, W) == (Bs, Hs, Ws)
    L = H * W

    # Pack 2 images per grid step (full sublane occupancy); pad odd batches
    # with a zero image, whose TV terms are exactly zero.
    n_img = 2 if B >= 2 else 1
    Bp = ((B + n_img - 1) // n_img) * n_img
    G = Bp // n_img

    # Lane-dense flatten (free reshape of contiguous HBM arrays), keep native
    # dtype so bf16 inputs stream at half the bytes.
    xf = x.reshape(B, C, L)
    sf = seg_map.reshape(B, Cs, L)
    if Bp != B:
        xf = jnp.concatenate([xf, jnp.zeros((Bp - B, C, L), xf.dtype)], axis=0)
        sf = jnp.concatenate([sf, jnp.zeros((Bp - B, Cs, L), sf.dtype)], axis=0)
    xp = xf.reshape(G, n_img * C, L)
    sp = sf.reshape(G, n_img * Cs, L)

    # Boundary-validity masks, hoisted out of the kernel (constant block that
    # the pipeline fetches once and keeps resident).
    col = jnp.arange(L, dtype=jnp.int32)
    h_mask = (col < (H - 1) * W).astype(jnp.float32)
    w_mask = ((col % W) != (W - 1)).astype(jnp.float32)
    masks = jnp.stack([h_mask, w_mask], axis=0)              # (2, L)

    # Lane-fold width of the per-step partial written back to HBM.
    TL = 128 if (L % 128 == 0 and L // 128 <= 512) else L

    # Generation-aware VMEM budget: double-buffered pipeline tiles plus the
    # in-kernel f32 temporaries live at peak, capped well below the physical
    # per-core capacity (64 MiB v7x, 128 MiB v5e/v6e).
    try:
        vmem_cap = int(pltpu.get_tpu_info().vmem_capacity_bytes)
    except Exception:
        vmem_cap = 64 << 20  # conservative fallback (v7x size)
    tile_bytes = (n_img * C * L * x.dtype.itemsize
                  + n_img * Cs * L * seg_map.dtype.itemsize
                  + 2 * L * 4 + TL * 4)
    temp_bytes = (3 * n_img * (C + Cs) + 8) * L * 4
    need = 2 * tile_bytes + temp_bytes + (4 << 20)
    vmem_limit = int(min(max(need, 16 << 20), int(0.72 * vmem_cap)))

    kernel = _make_l_smooth_kernel(C, Cs, L, W, n_img, TL)

    partial = pl.pallas_call(
        kernel,
        out_shape=jax.ShapeDtypeStruct((G, 1, TL), jnp.float32),
        grid_spec=pltpu.PrefetchScalarGridSpec(
            num_scalar_prefetch=0,
            grid=(G,),
            in_specs=[
                pl.BlockSpec((2, L), lambda g: (0, 0)),
                pl.BlockSpec((pl.Squeezed(), n_img * C, L), lambda g: (g, 0, 0)),
                pl.BlockSpec((pl.Squeezed(), n_img * Cs, L), lambda g: (g, 0, 0)),
            ],
            out_specs=pl.BlockSpec((1, 1, TL), lambda g: (g, 0, 0)),
        ),
        compiler_params=pltpu.CompilerParams(
            dimension_semantics=("parallel",),
            vmem_limit_bytes=vmem_limit,
        ),
    )(masks, xp, sp)

    # Tiny final reduction + batch normalization in plain JAX.
    return jnp.sum(partial) / B


def _l_smooth_ref(x, seg_map):
    # Pure-JAX reference (mirrors the PyTorch forward).
    B, _, H, W = x.shape
    seg_sm = jax.nn.softmax(seg_map, axis=1)
    seg_h_tv = jnp.mean((seg_sm[:, :, 1:, :] - seg_sm[:, :, :-1, :]) ** 2, axis=1)
    seg_w_tv = jnp.mean((seg_sm[:, :, :, 1:] - seg_sm[:, :, :, :-1]) ** 2, axis=1)
    h_tv = jnp.mean((x[:, :, 1:, :] - x[:, :, :-1, :]) ** 2, axis=1)
    w_tv = jnp.mean((x[:, :, :, 1:] - x[:, :, :, :-1]) ** 2, axis=1)
    wh = jnp.sum(h_tv * jnp.exp(-seg_h_tv))
    ww = jnp.sum(w_tv * jnp.exp(-seg_w_tv))
    return (wh + ww) / B


if __name__ == "__main__":
    key = jax.random.PRNGKey(0)
    kx, ks, kx2, ks2 = jax.random.split(key, 4)

    C, H, W = 4, 16, 16
    C_SEG = 3

    # f32 inputs, even batch: packed pairs, 2 parallel grid steps.
    B = 4
    x = jax.random.normal(kx, (B, C, H, W), dtype=jnp.float32)
    seg_map = jax.random.normal(ks, (B, C_SEG, H, W), dtype=jnp.float32)
    out = jax.block_until_ready(l_smooth(x, seg_map))
    ref = jax.block_until_ready(_l_smooth_ref(x, seg_map))
    assert jnp.allclose(out, ref, rtol=1e-3, atol=1e-4), (out, ref)

    # bf16 inputs (half the DMA bytes), odd batch: exercises zero padding.
    xb = jax.random.normal(kx2, (3, C, H, W), dtype=jnp.float32).astype(jnp.bfloat16)
    sb = jax.random.normal(ks2, (3, C_SEG, H, W), dtype=jnp.float32).astype(jnp.bfloat16)
    out_b = jax.block_until_ready(l_smooth(xb, sb))
    ref_b = jax.block_until_ready(
        _l_smooth_ref(xb.astype(jnp.float32), sb.astype(jnp.float32)))
    assert jnp.allclose(out_b, ref_b, rtol=1e-3, atol=1e-4), (out_b, ref_b)

    print("KERNEL_OK")
</pallas_src>

<mosaic_0001>
module attributes {stable_mosaic.version = 11 : i64} {
  func.func @kernel(%arg0: i32, %arg1: memref<2x256xf32, #tpu.memory_space<vmem>>, %arg2: memref<1x8x256xf32, #tpu.memory_space<vmem>>, %arg3: memref<1x6x256xf32, #tpu.memory_space<vmem>>, %arg4: memref<1x1x128xf32, #tpu.memory_space<vmem>>) attributes {dimension_semantics = [#tpu.dimension_semantics<parallel>], iteration_bounds = array<i64: 2>, scalar_prefetch = 0 : i64, scratch_operands = 0 : i64, tpu.core_type = #tpu.core_type<tc>, window_params = [{pipeline_mode = #tpu.pipeline_mode<synchronous>, transform_indices = @transform_0, window_bounds = array<i64: 2, 256>}, {transform_indices = @transform_1, window_bounds = array<i64: 1, 8, 256>}, {transform_indices = @transform_2, window_bounds = array<i64: 1, 6, 256>}, {transform_indices = @transform_3, window_bounds = array<i64: 1, 1, 128>}]} {
    %c0 = arith.constant 0 : index
    %c0_0 = arith.constant 0 : index
    %0 = vector.load %arg1[%c0, %c0_0] : memref<2x256xf32, #tpu.memory_space<vmem>>, vector<2x256xf32>
    %1 = vector.extract_strided_slice %0 {offsets = [0, 0], sizes = [1, 256], strides = [1, 1]} : vector<2x256xf32> to vector<1x256xf32>
    %2 = vector.extract_strided_slice %0 {offsets = [1, 0], sizes = [1, 256], strides = [1, 1]} : vector<2x256xf32> to vector<1x256xf32>
    %c0_1 = arith.constant 0 : index
    %c0_2 = arith.constant 0 : index
    %c0_3 = arith.constant 0 : index
    %3 = vector.load %arg2[%c0_1, %c0_2, %c0_3] : memref<1x8x256xf32, #tpu.memory_space<vmem>>, vector<1x8x256xf32>
    %4 = vector.shape_cast %3 : vector<1x8x256xf32> to vector<8x256xf32>
    %c0_4 = arith.constant 0 : index
    %c0_5 = arith.constant 0 : index
    %c0_6 = arith.constant 0 : index
    %5 = vector.load %arg3[%c0_4, %c0_5, %c0_6] : memref<1x6x256xf32, #tpu.memory_space<vmem>>, vector<1x6x256xf32>
    %6 = vector.shape_cast %5 : vector<1x6x256xf32> to vector<6x256xf32>
    %cst = arith.constant dense<0xFF800000> : vector<256xf32>
    %7 = vector.multi_reduction <maximumf>, %6, %cst [0] : vector<6x256xf32> to vector<256xf32>
    %8 = vector.shape_cast %7 : vector<256xf32> to vector<1x256xf32>
    %9 = vector.broadcast %8 : vector<1x256xf32> to vector<6x256xf32>
    %10 = arith.subf %6, %9 : vector<6x256xf32>
    %11 = math.exp %10 : vector<6x256xf32>
    %12 = vector.extract_strided_slice %11 {offsets = [0, 0], sizes = [3, 256], strides = [1, 1]} : vector<6x256xf32> to vector<3x256xf32>
    %cst_7 = arith.constant dense<0.000000e+00> : vector<256xf32>
    %13 = vector.multi_reduction <add>, %12, %cst_7 [0] : vector<3x256xf32> to vector<256xf32>
    %14 = vector.shape_cast %13 : vector<256xf32> to vector<1x256xf32>
    %15 = tpu.reciprocal %14 : vector<1x256xf32> -> vector<1x256xf32>
    %16 = vector.broadcast %15 : vector<1x256xf32> to vector<3x256xf32>
    %17 = arith.mulf %12, %16 : vector<3x256xf32>
    %18 = vector.extract_strided_slice %11 {offsets = [3, 0], sizes = [3, 256], strides = [1, 1]} : vector<6x256xf32> to vector<3x256xf32>
    %cst_8 = arith.constant dense<0.000000e+00> : vector<256xf32>
    %19 = vector.multi_reduction <add>, %18, %cst_8 [0] : vector<3x256xf32> to vector<256xf32>
    %20 = vector.shape_cast %19 : vector<256xf32> to vector<1x256xf32>
    %21 = tpu.reciprocal %20 : vector<1x256xf32> -> vector<1x256xf32>
    %22 = vector.broadcast %21 : vector<1x256xf32> to vector<3x256xf32>
    %23 = arith.mulf %18, %22 : vector<3x256xf32>
    %c240_i32 = arith.constant 240 : i32
    %24 = tpu.dynamic_rotate %4 by %c240_i32 dim 1 : vector<8x256xf32>, i32 -> vector<8x256xf32>
    %25 = arith.subf %24, %4 : vector<8x256xf32>
    %26 = arith.mulf %25, %25 : vector<8x256xf32>
    %27 = vector.extract_strided_slice %26 {offsets = [0, 0], sizes = [4, 256], strides = [1, 1]} : vector<8x256xf32> to vector<4x256xf32>
    %cst_9 = arith.constant dense<0.000000e+00> : vector<256xf32>
    %28 = vector.multi_reduction <add>, %27, %cst_9 [0] : vector<4x256xf32> to vector<256xf32>
    %29 = vector.shape_cast %28 : vector<256xf32> to vector<1x256xf32>
    %cst_10 = arith.constant 4.000000e+00 : f32
    %30 = vector.broadcast %cst_10 : f32 to vector<1x256xf32>
    %31 = arith.divf %29, %30 : vector<1x256xf32>
    %c240_i32_11 = arith.constant 240 : i32
    %32 = tpu.dynamic_rotate %17 by %c240_i32_11 dim 1 : vector<3x256xf32>, i32 -> vector<3x256xf32>
    %33 = arith.subf %32, %17 : vector<3x256xf32>
    %34 = arith.mulf %33, %33 : vector<3x256xf32>
    %cst_12 = arith.constant dense<0.000000e+00> : vector<256xf32>
    %35 = vector.multi_reduction <add>, %34, %cst_12 [0] : vector<3x256xf32> to vector<256xf32>
    %36 = vector.shape_cast %35 : vector<256xf32> to vector<1x256xf32>
    %cst_13 = arith.constant 3.000000e+00 : f32
    %37 = vector.broadcast %cst_13 : f32 to vector<1x256xf32>
    %38 = arith.divf %36, %37 : vector<1x256xf32>
    %cst_14 = arith.constant 0.000000e+00 : f32
    %39 = vector.broadcast %cst_14 : f32 to vector<1x256xf32>
    %40 = arith.subf %39, %38 : vector<1x256xf32>
    %41 = math.exp %40 : vector<1x256xf32>
    %42 = arith.mulf %31, %41 : vector<1x256xf32>
    %43 = vector.extract_strided_slice %26 {offsets = [4, 0], sizes = [4, 256], strides = [1, 1]} : vector<8x256xf32> to vector<4x256xf32>
    %cst_15 = arith.constant dense<0.000000e+00> : vector<256xf32>
    %44 = vector.multi_reduction <add>, %43, %cst_15 [0] : vector<4x256xf32> to vector<256xf32>
    %45 = vector.shape_cast %44 : vector<256xf32> to vector<1x256xf32>
    %cst_16 = arith.constant 4.000000e+00 : f32
    %46 = vector.broadcast %cst_16 : f32 to vector<1x256xf32>
    %47 = arith.divf %45, %46 : vector<1x256xf32>
    %c240_i32_17 = arith.constant 240 : i32
    %48 = tpu.dynamic_rotate %23 by %c240_i32_17 dim 1 : vector<3x256xf32>, i32 -> vector<3x256xf32>
    %49 = arith.subf %48, %23 : vector<3x256xf32>
    %50 = arith.mulf %49, %49 : vector<3x256xf32>
    %cst_18 = arith.constant dense<0.000000e+00> : vector<256xf32>
    %51 = vector.multi_reduction <add>, %50, %cst_18 [0] : vector<3x256xf32> to vector<256xf32>
    %52 = vector.shape_cast %51 : vector<256xf32> to vector<1x256xf32>
    %cst_19 = arith.constant 3.000000e+00 : f32
    %53 = vector.broadcast %cst_19 : f32 to vector<1x256xf32>
    %54 = arith.divf %52, %53 : vector<1x256xf32>
    %cst_20 = arith.constant 0.000000e+00 : f32
    %55 = vector.broadcast %cst_20 : f32 to vector<1x256xf32>
    %56 = arith.subf %55, %54 : vector<1x256xf32>
    %57 = math.exp %56 : vector<1x256xf32>
    %58 = arith.mulf %47, %57 : vector<1x256xf32>
    %59 = arith.addf %42, %58 : vector<1x256xf32>
    %60 = arith.mulf %59, %1 : vector<1x256xf32>
    %c255_i32 = arith.constant 255 : i32
    %61 = tpu.dynamic_rotate %4 by %c255_i32 dim 1 : vector<8x256xf32>, i32 -> vector<8x256xf32>
    %62 = arith.subf %61, %4 : vector<8x256xf32>
    %63 = arith.mulf %62, %62 : vector<8x256xf32>
    %64 = vector.extract_strided_slice %63 {offsets = [0, 0], sizes = [4, 256], strides = [1, 1]} : vector<8x256xf32> to vector<4x256xf32>
    %cst_21 = arith.constant dense<0.000000e+00> : vector<256xf32>
    %65 = vector.multi_reduction <add>, %64, %cst_21 [0] : vector<4x256xf32> to vector<256xf32>
    %66 = vector.shape_cast %65 : vector<256xf32> to vector<1x256xf32>
    %cst_22 = arith.constant 4.000000e+00 : f32
    %67 = vector.broadcast %cst_22 : f32 to vector<1x256xf32>
    %68 = arith.divf %66, %67 : vector<1x256xf32>
    %c255_i32_23 = arith.constant 255 : i32
    %69 = tpu.dynamic_rotate %17 by %c255_i32_23 dim 1 : vector<3x256xf32>, i32 -> vector<3x256xf32>
    %70 = arith.subf %69, %17 : vector<3x256xf32>
    %71 = arith.mulf %70, %70 : vector<3x256xf32>
    %cst_24 = arith.constant dense<0.000000e+00> : vector<256xf32>
    %72 = vector.multi_reduction <add>, %71, %cst_24 [0] : vector<3x256xf32> to vector<256xf32>
    %73 = vector.shape_cast %72 : vector<256xf32> to vector<1x256xf32>
    %cst_25 = arith.constant 3.000000e+00 : f32
    %74 = vector.broadcast %cst_25 : f32 to vector<1x256xf32>
    %75 = arith.divf %73, %74 : vector<1x256xf32>
    %cst_26 = arith.constant 0.000000e+00 : f32
    %76 = vector.broadcast %cst_26 : f32 to vector<1x256xf32>
    %77 = arith.subf %76, %75 : vector<1x256xf32>
    %78 = math.exp %77 : vector<1x256xf32>
    %79 = arith.mulf %68, %78 : vector<1x256xf32>
    %80 = vector.extract_strided_slice %63 {offsets = [4, 0], sizes = [4, 256], strides = [1, 1]} : vector<8x256xf32> to vector<4x256xf32>
    %cst_27 = arith.constant dense<0.000000e+00> : vector<256xf32>
    %81 = vector.multi_reduction <add>, %80, %cst_27 [0] : vector<4x256xf32> to vector<256xf32>
    %82 = vector.shape_cast %81 : vector<256xf32> to vector<1x256xf32>
    %cst_28 = arith.constant 4.000000e+00 : f32
    %83 = vector.broadcast %cst_28 : f32 to vector<1x256xf32>
    %84 = arith.divf %82, %83 : vector<1x256xf32>
    %c255_i32_29 = arith.constant 255 : i32
    %85 = tpu.dynamic_rotate %23 by %c255_i32_29 dim 1 : vector<3x256xf32>, i32 -> vector<3x256xf32>
    %86 = arith.subf %85, %23 : vector<3x256xf32>
    %87 = arith.mulf %86, %86 : vector<3x256xf32>
    %cst_30 = arith.constant dense<0.000000e+00> : vector<256xf32>
    %88 = vector.multi_reduction <add>, %87, %cst_30 [0] : vector<3x256xf32> to vector<256xf32>
    %89 = vector.shape_cast %88 : vector<256xf32> to vector<1x256xf32>
    %cst_31 = arith.constant 3.000000e+00 : f32
    %90 = vector.broadcast %cst_31 : f32 to vector<1x256xf32>
    %91 = arith.divf %89, %90 : vector<1x256xf32>
    %cst_32 = arith.constant 0.000000e+00 : f32
    %92 = vector.broadcast %cst_32 : f32 to vector<1x256xf32>
    %93 = arith.subf %92, %91 : vector<1x256xf32>
    %94 = math.exp %93 : vector<1x256xf32>
    %95 = arith.mulf %84, %94 : vector<1x256xf32>
    %96 = arith.addf %79, %95 : vector<1x256xf32>
    %97 = arith.mulf %96, %2 : vector<1x256xf32>
    %98 = arith.addf %60, %97 : vector<1x256xf32>
    %99 = vector.extract_strided_slice %98 {offsets = [0, 0], sizes = [1, 128], strides = [1, 1]} : vector<1x256xf32> to vector<1x128xf32>
    %100 = vector.extract_strided_slice %98 {offsets = [0, 128], sizes = [1, 128], strides = [1, 1]} : vector<1x256xf32> to vector<1x128xf32>
    %101 = arith.addf %99, %100 : vector<1x128xf32>
    %c0_33 = arith.constant 0 : index
    %c0_34 = arith.constant 0 : index
    %c0_35 = arith.constant 0 : index
    %102 = vector.load %arg4[%c0_33, %c0_34, %c0_35] : memref<1x1x128xf32, #tpu.memory_space<vmem>>, vector<1x1x128xf32>
    %103 = vector.shape_cast %102 : vector<1x1x128xf32> to vector<1x128xf32>
    %104 = vector.shape_cast %101 : vector<1x128xf32> to vector<1x1x128xf32>
    tpu.vector_store %arg4[%c0_33, %c0_34, %c0_35], %104 {strides = array<i32>} : memref<1x1x128xf32, #tpu.memory_space<vmem>>, vector<1x1x128xf32>,
    return
  }
  func.func @transform_0(%arg0: i32) -> (i32, i32) {
    %c0_i32 = arith.constant 0 : i32
    %c0_i32_0 = arith.constant 0 : i32
    %c0_i32_1 = arith.constant 0 : i32
    return %c0_i32, %c0_i32_0 : i32, i32
  }
  func.func @transform_1(%arg0: i32) -> (i32, i32, i32) {
    %c0_i32 = arith.constant 0 : i32
    %c0_i32_0 = arith.constant 0 : i32
    %c0_i32_1 = arith.constant 0 : i32
    return %arg0, %c0_i32, %c0_i32_0 : i32, i32, i32
  }
  func.func @transform_2(%arg0: i32) -> (i32, i32, i32) {
    %c0_i32 = arith.constant 0 : i32
    %c0_i32_0 = arith.constant 0 : i32
    %c0_i32_1 = arith.constant 0 : i32
    return %arg0, %c0_i32, %c0_i32_0 : i32, i32, i32
  }
  func.func @transform_3(%arg0: i32) -> (i32, i32, i32) {
    %c0_i32 = arith.constant 0 : i32
    %c0_i32_0 = arith.constant 0 : i32
    %c0_i32_1 = arith.constant 0 : i32
    return %arg0, %c0_i32, %c0_i32_0 : i32, i32, i32
  }
}

</mosaic_0001>

<llo_original>
// kernel: tpu_custom_call.1
$region0: #{tpu_custom_call.1}
  #allocation0 [shape = 'u32[]', space=smem, size = 0x4, offset = 0x4, fixed_abs, tag = 'smem constant byte address 0x4 - core index']
  #allocation1 [shape = 'u32[144,128]{1,0:T(1,128)}', space=vmem, size = 0x12000, scoped, tag = 'internal scratch']
  %s0 = inlined_call_operand.vmem [shape: f32[2,256], index: 0, kind: input, shape index: {}]
  %s1 = inlined_call_operand.vmem [shape: f32[2,8,256], index: 1, kind: input, shape index: {}]
  %s2 = inlined_call_operand.vmem [shape: f32[2,6,256], index: 2, kind: input, shape index: {}]
  %s3 = inlined_call_operand.hbm [shape: f32[2,1,128], index: 3, kind: output, shape index: {}]
  %s4 = sld [smem:[#allocation0]]
  $region45: #{tpu_custom_call.1} parent=0
    _
  %s6 = ssub.s32 1, %s4
  %s7 = scalar_select 0, %s6, %s4
  $region1: #{tpu_custom_call.1} parent=0
    #allocation2 [shape = 'u8[1024]{0}', space=vmem, size = 0x400, scoped, tag = 'output window, operand 0']
    #allocation3 [shape = 's32[2]{0}', space=sflag, size = 0x8, scoped, tag = 'scoped memory for tpu_custom_call.1']
    %8 = vsyncpa [#allocation3], 0
    %s9 = scalar_lea.sflag [#allocation3], 1
    %10 = vsyncpa %s9, 0
    loop: start=0, step=1, limit=4
    $region2: #{tpu_custom_call.1} parent=1 // loop_pre_header
      _
    $region3: #{tpu_custom_call.1} parent=1 // loop_header
      %s12 = sphi 0, %s16
      %p13 = scmp.ge.s32.totalorder %s12, 4
      %s20 = sphi 0, %s20
      %s22 = sphi 0, %s20
      %s23 = sphi 0, %s22
      %s37 = sphi 0, %s23
      %s43 = sphi 0, %s45
      %s46 = sphi 0, %s43
      %s47 = sphi 0, %s46
      %s63 = sphi 0, %s47
      %s69 = sphi 0, %s71
      %s72 = sphi 0, %s69
      %s73 = sphi 0, %s72
      %s89 = sphi 0, %s73
      %s95 = sphi 0, %s97
      %s98 = sphi 0, %s95
      %s99 = sphi 0, %s98
      %s115 = sphi 0, %s99
    $region4: #{tpu_custom_call.1} parent=1 // loop_header_branch
      %15 = sbr.rel (%p13) target = $region8
    $region5: #{tpu_custom_call.1} parent=1 // loop_body
      %s17 = ssub.s32 %s12, 1
      %s18 = ssub.s32 %s12, 2
      %s19 = sadd.s32 %s12, 1
      %s21 = sadd.s32 %s20, 1
      %p24 = scmp.eq.s32.totalorder %s12, 1
      %p25 = scmp.ne.s32.totalorder %s20, %s22
      %p26 = scmp.eq.s32.totalorder %s12, 0
      %p27 = por %p25, %p26
      %p28 = scmp.ne.s32.totalorder %s20, %s22
      %p29 = scmp.eq.s32.totalorder %s17, 1
      %p30 = por %p28, %p29
      %p31 = scmp.ne.s32.totalorder %s22, %s23
      %p32 = scmp.eq.s32.totalorder %s17, 0
      %p33 = por %p31, %p32
      %p34 = scmp.ne.s32.totalorder %s22, %s23
      %p35 = scmp.eq.s32.totalorder %s18, 1
      %p36 = por %p34, %p35
      %p38 = scmp.ne.s32.totalorder %s23, %s37
      %p39 = scmp.eq.s32.totalorder %s18, 0
      %p40 = por %p38, %p39
      %s41 = ssub.s32 %s12, %s19
      %p42 = scmp.eq.s32.totalorder %s41, 0
      %s44 = sadd.s32 %s43, 1
      %s45 = scalar_select %p42, %s43, %s44
      %p48 = pneg %p42
      %p49 = scmp.eq.s32.totalorder %s12, 1
      %p50 = por %p48, %p49
      %p51 = scmp.ne.s32.totalorder %s43, %s46
      %p52 = scmp.eq.s32.totalorder %s12, 0
      %p53 = por %p51, %p52
      %p54 = scmp.ne.s32.totalorder %s43, %s46
      %p55 = scmp.eq.s32.totalorder %s17, 1
      %p56 = por %p54, %p55
      %p57 = scmp.ne.s32.totalorder %s46, %s47
      %p58 = scmp.eq.s32.totalorder %s17, 0
      %p59 = por %p57, %p58
      %p60 = scmp.ne.s32.totalorder %s46, %s47
      %p61 = scmp.eq.s32.totalorder %s18, 1
      %p62 = por %p60, %p61
      %p64 = scmp.ne.s32.totalorder %s47, %s63
      %p65 = scmp.eq.s32.totalorder %s18, 0
      %p66 = por %p64, %p65
      %s67 = ssub.s32 %s12, %s19
      %p68 = scmp.eq.s32.totalorder %s67, 0
      %s70 = sadd.s32 %s69, 1
      %s71 = scalar_select %p68, %s69, %s70
      %p74 = pneg %p68
      %p75 = scmp.eq.s32.totalorder %s12, 1
      %p76 = por %p74, %p75
      %p77 = scmp.ne.s32.totalorder %s69, %s72
      %p78 = scmp.eq.s32.totalorder %s12, 0
      %p79 = por %p77, %p78
      %p80 = scmp.ne.s32.totalorder %s69, %s72
      %p81 = scmp.eq.s32.totalorder %s17, 1
      %p82 = por %p80, %p81
      %p83 = scmp.ne.s32.totalorder %s72, %s73
      %p84 = scmp.eq.s32.totalorder %s17, 0
      %p85 = por %p83, %p84
      %p86 = scmp.ne.s32.totalorder %s72, %s73
      %p87 = scmp.eq.s32.totalorder %s18, 1
      %p88 = por %p86, %p87
      %p90 = scmp.ne.s32.totalorder %s73, %s89
      %p91 = scmp.eq.s32.totalorder %s18, 0
      %p92 = por %p90, %p91
      %s93 = ssub.s32 %s12, %s19
      %p94 = scmp.eq.s32.totalorder %s93, 0
      %s96 = sadd.s32 %s95, 1
      %s97 = scalar_select %p94, %s95, %s96
      %p100 = pneg %p94
      %p101 = scmp.eq.s32.totalorder %s12, 1
      %p102 = por %p100, %p101
      %p103 = scmp.ne.s32.totalorder %s95, %s98
      %p104 = scmp.eq.s32.totalorder %s12, 0
      %p105 = por %p103, %p104
      %p106 = scmp.ne.s32.totalorder %s95, %s98
      %p107 = scmp.eq.s32.totalorder %s17, 1
      %p108 = por %p106, %p107
      %p109 = scmp.ne.s32.totalorder %s98, %s99
      %p110 = scmp.eq.s32.totalorder %s17, 0
      %p111 = por %p109, %p110
      %p112 = scmp.ne.s32.totalorder %s98, %s99
      %p113 = scmp.eq.s32.totalorder %s18, 1
      %p114 = por %p112, %p113
      %p116 = scmp.ne.s32.totalorder %s99, %s115
      %p117 = scmp.eq.s32.totalorder %s18, 0
      %p118 = por %p116, %p117
      %p119 = scmp.le.s32.totalorder 1, %s12
      %p120 = scmp.lt.s32.totalorder %s12, 3
      %p121 = pnand %p119, %p120
      %p122 = pneg %p121
      // Predicated region
      $region9: #{tpu_custom_call.1} parent=5 // pred_check
        _
      $region10: #{tpu_custom_call.1} parent=5 // pred_check_branch
        %124 = sbr.rel (%p121) target = $region12
      $region11: #{tpu_custom_call.1} parent=5 // pred_region
        %s125 = ssub.s32 %s12, 1
        // Predicated region
        $region13: #{tpu_custom_call.1} parent=11 // pred_check
          %p126 = pneg %p33
        $region14: #{tpu_custom_call.1} parent=11 // pred_check_branch
          %128 = sbr.rel (%p126) target = $region16
        $region15: #{tpu_custom_call.1} parent=11 // pred_region
          _
        $region16: #{tpu_custom_call.1} parent=11 // pred_fallthru
          _
      $region12: #{tpu_custom_call.1} parent=5 // pred_fallthru
        _
      %p129 = scmp.lt.s32.totalorder %s12, 2
      // Predicated region
      $region17: #{tpu_custom_call.1} parent=5 // pred_check
        %p130 = pneg %p129
      $region18: #{tpu_custom_call.1} parent=5 // pred_check_branch
        %132 = sbr.rel (%p130) target = $region20
      $region19: #{tpu_custom_call.1} parent=5 // pred_region
        // Predicated region
        $region21: #{tpu_custom_call.1} parent=19 // pred_check
          %p133 = pneg %p53
        $region22: #{tpu_custom_call.1} parent=19 // pred_check_branch
          %135 = sbr.rel (%p133) target = $region24
        $region23: #{tpu_custom_call.1} parent=19 // pred_region
          %p136 = scmp.lt.s32.totalorder %s12, 1
          %s137 = scalar_select %p136, %s12, 1
          %s138 = smul.addr %s137, 2
          %s139 = smul.addr %s138, 8
          %s140 = scalar_lea.vmem %s1, %s139
        $region24: #{tpu_custom_call.1} parent=19 // pred_fallthru
          _
        // Predicated region
        $region25: #{tpu_custom_call.1} parent=19 // pred_check
          %p141 = pneg %p79
        $region26: #{tpu_custom_call.1} parent=19 // pred_check_branch
          %143 = sbr.rel (%p141) target = $region28
        $region27: #{tpu_custom_call.1} parent=19 // pred_region
          %p144 = scmp.lt.s32.totalorder %s12, 1
          %s145 = scalar_select %p144, %s12, 1
          %s146 = smul.addr %s145, 2
          %s147 = smul.addr %s146, 8
          %s148 = scalar_lea.vmem %s2, %s147
        $region28: #{tpu_custom_call.1} parent=19 // pred_fallthru
          _
      $region20: #{tpu_custom_call.1} parent=5 // pred_fallthru
        _
      %p149 = scmp.le.s32.totalorder 1, %s12
      %p150 = scmp.lt.s32.totalorder %s12, 3
      %p151 = pnand %p149, %p150
      %p152 = pneg %p151
      // Predicated region
      $region29: #{tpu_custom_call.1} parent=5 // pred_check
        _
      $region30: #{tpu_custom_call.1} parent=5 // pred_check_branch
        %154 = sbr.rel (%p151) target = $region32
      $region31: #{tpu_custom_call.1} parent=5 // pred_region
        %s155 = ssub.s32 %s12, 1
        %p156 = pneg %p33
        %p157 = pneg %p30
        %p158 = scmp.lt.s32.totalorder %s17, 1
        %s159 = scalar_select %p158, %s17, 1
        %s160 = smul.addr %s159, 2
        %s161 = smul.addr %s160, 8
        %s162 = scalar_lea.vmem %s1, %s161
        %p163 = pneg %p59
        %p164 = pneg %p56
        %p165 = scmp.lt.s32.totalorder %s17, 1
        %s166 = scalar_select %p165, %s17, 1
        %s167 = smul.addr %s166, 2
        %s168 = smul.addr %s167, 8
        %s169 = scalar_lea.vmem %s2, %s168
        %p170 = pneg %p85
        %p171 = pneg %p82
        %p172 = pneg %p111
        %p173 = pneg %p108
        %s174 = sand.u32 %s98, 1
        %s175 = scalar_lea.sflag [#allocation3], %s174
        %s176 = sand.u32 %s98, 1
        %s177 = scalar_lea.vmem [#allocation2], %s176
        %p178 = scmp.lt.s32.totalorder %s17, 1
        %s179 = scalar_select %p178, %s17, 1
        %s180 = smul.addr %s179, 2
        %s181 = smul.addr %s180, 8
        %s182 = scalar_lea.vmem %s1, %s181
        %p183 = scmp.lt.s32.totalorder %s17, 1
        %s184 = scalar_select %p183, %s17, 1
        %s185 = smul.addr %s184, 2
        %s186 = smul.addr %s185, 8
        %s187 = scalar_lea.vmem %s2, %s186
        %v188 = vld [vmem:[%s0] sm:$0xf]
        %v189 = vld [vmem:[%s182] sm:$0xff]
        %v190 = vld [vmem:[%s182 + $0x8] sm:$0xff]
        %v191 = vld [vmem:[%s187] sm:$0x3f]
        %v192 = vld [vmem:[%s187 + $0x8] sm:$0x3f]
        %vm193 = vcmask 1045504
        %v194 = vsel %vm193, %v191, -inf
        %v195 = vrot.slane %v194, 4
        %v196 = vmax.f32 %v194, %v195
        %v197 = vrot.slane %v196, 2
        %v198 = vmax.f32 %v196, %v197
        %v199 = vrot.slane %v198, 1
        %v200 = vmax.f32 %v198, %v199
        %v201 = vsel %vm193, %v192, -inf
        %v202 = vrot.slane %v201, 4
        %v203 = vmax.f32 %v201, %v202
        %v204 = vrot.slane %v203, 2
        %v205 = vmax.f32 %v203, %v204
        %v206 = vrot.slane %v205, 1
        %v207 = vmax.f32 %v205, %v206
        %v208 = vsub.f32 %v191, %v200
        %v209 = vsub.f32 %v192, %v207
        %v210 = vmul.f32 %v208, 1.442695
        %v211 = vpow.pop %v210
        %v212 = vmul.f32 %v209, 1.442695
        %v213 = vpow.pop %v212
        %vm214 = vcmask 1042432
        %v215 = vsel %vm214, %v211, 0.0
        %v216 = vrot.slane %v215, 4
        %v217 = vadd.f32 %v215, %v216
        %v218 = vrot.slane %v217, 2
        %v219 = vadd.f32 %v217, %v218
        %v220 = vrot.slane %v219, 1
        %v221 = vadd.f32 %v219, %v220
        %v222 = vsel %vm214, %v213, 0.0
        %v223 = vrot.slane %v222, 4
        %v224 = vadd.f32 %v222, %v223
        %v225 = vrot.slane %v224, 2
        %v226 = vadd.f32 %v224, %v225
        %v227 = vrot.slane %v226, 1
        %v228 = vadd.f32 %v226, %v227
        %v229 = vrcp.pop %v221
        %v230 = vrcp.pop %v228
        %v231 = vmul.f32 %v211, %v229
        %v232 = vmul.f32 %v213, %v230
        %v235 = vrot.slane %v211, 3
        %v236 = vrot.slane %v213, 3
        %v239 = vsel %vm214, %v235, 0.0
        %v240 = vrot.slane %v239, 4
        %v241 = vadd.f32 %v239, %v240
        %v242 = vrot.slane %v241, 2
        %v243 = vadd.f32 %v241, %v242
        %v244 = vrot.slane %v243, 1
        %v245 = vadd.f32 %v243, %v244
        %v246 = vsel %vm214, %v236, 0.0
        %v247 = vrot.slane %v246, 4
        %v248 = vadd.f32 %v246, %v247
        %v249 = vrot.slane %v248, 2
        %v250 = vadd.f32 %v248, %v249
        %v251 = vrot.slane %v250, 1
        %v252 = vadd.f32 %v250, %v251
        %v253 = vrcp.pop %v245
        %v254 = vrcp.pop %v252
        %v255 = vmul.f32 %v211, %v253
        %v256 = vmul.f32 %v213, %v254
        %257 = vrot.lane.b32.xlu0 %v189, 112
        %v258 = vpop.permute.xlu0 %257
        %259 = vrot.lane.b32.xlu0 %v190, 112
        %v260 = vpop.permute.xlu0 %259
        %v261 = vlaneseq
        %v262 = vand.u32 %v261, 127
        %vm263 = vcmp.lt.s32.totalorder %v262, 112
        %v264 = vsel %vm263, %v258, %v260
        %v265 = vsel %vm263, %v260, %v258
        %v266 = vsub.f32 %v264, %v189
        %v267 = vsub.f32 %v265, %v190
        %v268 = vmul.f32 %v266, %v266
        %v269 = vmul.f32 %v267, %v267
        %vm270 = vcmask 1043456
        %v271 = vsel %vm270, %v268, 0.0
        %v272 = vrot.slane %v271, 4
        %v273 = vadd.f32 %v271, %v272
        %v274 = vrot.slane %v273, 2
        %v275 = vadd.f32 %v273, %v274
        %v276 = vrot.slane %v275, 1
        %v277 = vadd.f32 %v275, %v276
        %v278 = vsel %vm270, %v269, 0.0
        %v279 = vrot.slane %v278, 4
        %v280 = vadd.f32 %v278, %v279
        %v281 = vrot.slane %v280, 2
        %v282 = vadd.f32 %v280, %v281
        %v283 = vrot.slane %v282, 1
        %v284 = vadd.f32 %v282, %v283
        %v285 = vrcp.pop 4.0
        %v286 = vmul.f32 %v277, %v285
        %v287 = vmul.f32 %v284, %v285
        %288 = vrot.lane.b32.xlu0 %v231, 112
        %v289 = vpop.permute.xlu0 %288
        %290 = vrot.lane.b32.xlu0 %v232, 112
        %v291 = vpop.permute.xlu0 %290
        %v292 = vsel %vm263, %v289, %v291
        %v293 = vsel %vm263, %v291, %v289
        %v294 = vsub.f32 %v292, %v231
        %v295 = vsub.f32 %v293, %v232
        %v296 = vmul.f32 %v294, %v294
        %v297 = vmul.f32 %v295, %v295
        %v298 = vsel %vm214, %v296, 0.0
        %v299 = vrot.slane %v298, 4
        %v300 = vadd.f32 %v298, %v299
        %v301 = vrot.slane %v300, 2
        %v302 = vadd.f32 %v300, %v301
        %v303 = vrot.slane %v302, 1
        %v304 = vadd.f32 %v302, %v303
        %v305 = vsel %vm214, %v297, 0.0
        %v306 = vrot.slane %v305, 4
        %v307 = vadd.f32 %v305, %v306
        %v308 = vrot.slane %v307, 2
        %v309 = vadd.f32 %v307, %v308
        %v310 = vrot.slane %v309, 1
        %v311 = vadd.f32 %v309, %v310
        %v312 = vrcp.pop 3.0
        %v313 = vmul.f32 %v304, %v312
        %v314 = vmul.f32 %v311, %v312
        %v315 = vsub.f32 0.0, %v313
        %v316 = vsub.f32 0.0, %v314
        %v317 = vmul.f32 %v315, 1.442695
        %v318 = vpow.pop %v317
        %v319 = vmul.f32 %v316, 1.442695
        %v320 = vpow.pop %v319
        %v321 = vmul.f32 %v286, %v318
        %v322 = vmul.f32 %v287, %v320
        %v325 = vrot.slane %v268, 4
        %v326 = vrot.slane %v269, 4
        %v329 = vsel %vm270, %v325, 0.0
        %v330 = vrot.slane %v329, 4
        %v331 = vadd.f32 %v329, %v330
        %v332 = vrot.slane %v331, 2
        %v333 = vadd.f32 %v331, %v332
        %v334 = vrot.slane %v333, 1
        %v335 = vadd.f32 %v333, %v334
        %v336 = vsel %vm270, %v326, 0.0
        %v337 = vrot.slane %v336, 4
        %v338 = vadd.f32 %v336, %v337
        %v339 = vrot.slane %v338, 2
        %v340 = vadd.f32 %v338, %v339
        %v341 = vrot.slane %v340, 1
        %v342 = vadd.f32 %v340, %v341
        %v343 = vmul.f32 %v335, %v285
        %v344 = vmul.f32 %v342, %v285
        %v347 = vrot.slane %v255, 3
        %v348 = vrot.slane %v256, 3
        %351 = vrot.lane.b32.xlu0 %v347, 112
        %v352 = vpop.permute.xlu0 %351
        %353 = vrot.lane.b32.xlu0 %v348, 112
        %v354 = vpop.permute.xlu0 %353
        %v355 = vsel %vm263, %v352, %v354
        %v356 = vsel %vm263, %v354, %v352
        %v357 = vsub.f32 %v355, %v347
        %v358 = vsub.f32 %v356, %v348
        %v359 = vmul.f32 %v357, %v357
        %v360 = vmul.f32 %v358, %v358
        %v361 = vsel %vm214, %v359, 0.0
        %v362 = vrot.slane %v361, 4
        %v363 = vadd.f32 %v361, %v362
        %v364 = vrot.slane %v363, 2
        %v365 = vadd.f32 %v363, %v364
        %v366 = vrot.slane %v365, 1
        %v367 = vadd.f32 %v365, %v366
        %v368 = vsel %vm214, %v360, 0.0
        %v369 = vrot.slane %v368, 4
        %v370 = vadd.f32 %v368, %v369
        %v371 = vrot.slane %v370, 2
        %v372 = vadd.f32 %v370, %v371
        %v373 = vrot.slane %v372, 1
        %v374 = vadd.f32 %v372, %v373
        %v375 = vmul.f32 %v367, %v312
        %v376 = vmul.f32 %v374, %v312
        %v377 = vsub.f32 0.0, %v375
        %v378 = vsub.f32 0.0, %v376
        %v379 = vmul.f32 %v377, 1.442695
        %v380 = vpow.pop %v379
        %v381 = vmul.f32 %v378, 1.442695
        %v382 = vpow.pop %v381
        %v383 = vmul.f32 %v343, %v380
        %v384 = vmul.f32 %v344, %v382
        %v385 = vadd.f32 %v321, %v383
        %v386 = vadd.f32 %v322, %v384
        %v388 = vlaneseq
        %v389 = vshrl.u32 %v388, 7
        %v390 = vsub.s32 0, %v389
        %v391 = vrot.slane %v188, %v390
        %v392 = vlaneseq
        %v393 = vshrl.u32 %v392, 7
        %v394 = vsub.s32 2, %v393
        %v395 = vrot.slane %v188, %v394
        %v398 = vmul.f32 %v385, %v391
        %v399 = vmul.f32 %v386, %v395
        %400 = vrot.lane.b32.xlu0 %v189, 127
        %v401 = vpop.permute.xlu0 %400
        %402 = vrot.lane.b32.xlu0 %v190, 127
        %v403 = vpop.permute.xlu0 %402
        %vm404 = vcmp.lt.s32.totalorder %v262, 127
        %v405 = vsel %vm404, %v401, %v403
        %v406 = vsel %vm404, %v403, %v401
        %v407 = vsub.f32 %v405, %v189
        %v408 = vsub.f32 %v406, %v190
        %v409 = vmul.f32 %v407, %v407
        %v410 = vmul.f32 %v408, %v408
        %v411 = vsel %vm270, %v409, 0.0
        %v412 = vrot.slane %v411, 4
        %v413 = vadd.f32 %v411, %v412
        %v414 = vrot.slane %v413, 2
        %v415 = vadd.f32 %v413, %v414
        %v416 = vrot.slane %v415, 1
        %v417 = vadd.f32 %v415, %v416
        %v418 = vsel %vm270, %v410, 0.0
        %v419 = vrot.slane %v418, 4
        %v420 = vadd.f32 %v418, %v419
        %v421 = vrot.slane %v420, 2
        %v422 = vadd.f32 %v420, %v421
        %v423 = vrot.slane %v422, 1
        %v424 = vadd.f32 %v422, %v423
        %v425 = vmul.f32 %v417, %v285
        %v426 = vmul.f32 %v424, %v285
        %427 = vrot.lane.b32.xlu0 %v231, 127
        %v428 = vpop.permute.xlu0 %427
        %429 = vrot.lane.b32.xlu0 %v232, 127
        %v430 = vpop.permute.xlu0 %429
        %v431 = vsel %vm404, %v428, %v430
        %v432 = vsel %vm404, %v430, %v428
        %v433 = vsub.f32 %v431, %v231
        %v434 = vsub.f32 %v432, %v232
        %v435 = vmul.f32 %v433, %v433
        %v436 = vmul.f32 %v434, %v434
        %v437 = vsel %vm214, %v435, 0.0
        %v438 = vrot.slane %v437, 4
        %v439 = vadd.f32 %v437, %v438
        %v440 = vrot.slane %v439, 2
        %v441 = vadd.f32 %v439, %v440
        %v442 = vrot.slane %v441, 1
        %v443 = vadd.f32 %v441, %v442
        %v444 = vsel %vm214, %v436, 0.0
        %v445 = vrot.slane %v444, 4
        %v446 = vadd.f32 %v444, %v445
        %v447 = vrot.slane %v446, 2
        %v448 = vadd.f32 %v446, %v447
        %v449 = vrot.slane %v448, 1
        %v450 = vadd.f32 %v448, %v449
        %v451 = vmul.f32 %v443, %v312
        %v452 = vmul.f32 %v450, %v312
        %v453 = vsub.f32 0.0, %v451
        %v454 = vsub.f32 0.0, %v452
        %v455 = vmul.f32 %v453, 1.442695
        %v456 = vpow.pop %v455
        %v457 = vmul.f32 %v454, 1.442695
        %v458 = vpow.pop %v457
        %v459 = vmul.f32 %v425, %v456
        %v460 = vmul.f32 %v426, %v458
        %v463 = vrot.slane %v409, 4
        %v464 = vrot.slane %v410, 4
        %v467 = vsel %vm270, %v463, 0.0
        %v468 = vrot.slane %v467, 4
        %v469 = vadd.f32 %v467, %v468
        %v470 = vrot.slane %v469, 2
        %v471 = vadd.f32 %v469, %v470
        %v472 = vrot.slane %v471, 1
        %v473 = vadd.f32 %v471, %v472
        %v474 = vsel %vm270, %v464, 0.0
        %v475 = vrot.slane %v474, 4
        %v476 = vadd.f32 %v474, %v475
        %v477 = vrot.slane %v476, 2
        %v478 = vadd.f32 %v476, %v477
        %v479 = vrot.slane %v478, 1
        %v480 = vadd.f32 %v478, %v479
        %v481 = vmul.f32 %v473, %v285
        %v482 = vmul.f32 %v480, %v285
        %483 = vrot.lane.b32.xlu0 %v347, 127
        %v484 = vpop.permute.xlu0 %483
        %485 = vrot.lane.b32.xlu0 %v348, 127
        %v486 = vpop.permute.xlu0 %485
        %v487 = vsel %vm404, %v484, %v486
        %v488 = vsel %vm404, %v486, %v484
        %v489 = vsub.f32 %v487, %v347
        %v490 = vsub.f32 %v488, %v348
        %v491 = vmul.f32 %v489, %v489
        %v492 = vmul.f32 %v490, %v490
        %v493 = vsel %vm214, %v491, 0.0
        %v494 = vrot.slane %v493, 4
        %v495 = vadd.f32 %v493, %v494
        %v496 = vrot.slane %v495, 2
        %v497 = vadd.f32 %v495, %v496
        %v498 = vrot.slane %v497, 1
        %v499 = vadd.f32 %v497, %v498
        %v500 = vsel %vm214, %v492, 0.0
        %v501 = vrot.slane %v500, 4
        %v502 = vadd.f32 %v500, %v501
        %v503 = vrot.slane %v502, 2
        %v504 = vadd.f32 %v502, %v503
        %v505 = vrot.slane %v504, 1
        %v506 = vadd.f32 %v504, %v505
        %v507 = vmul.f32 %v499, %v312
        %v508 = vmul.f32 %v506, %v312
        %v509 = vsub.f32 0.0, %v507
        %v510 = vsub.f32 0.0, %v508
        %v511 = vmul.f32 %v509, 1.442695
        %v512 = vpow.pop %v511
        %v513 = vmul.f32 %v510, 1.442695
        %v514 = vpow.pop %v513
        %v515 = vmul.f32 %v481, %v512
        %v516 = vmul.f32 %v482, %v514
        %v517 = vadd.f32 %v459, %v515
        %v518 = vadd.f32 %v460, %v516
        %v519 = vlaneseq
        %v520 = vshrl.u32 %v519, 7
        %v521 = vsub.s32 1, %v520
        %v522 = vrot.slane %v188, %v521
        %v523 = vlaneseq
        %v524 = vshrl.u32 %v523, 7
        %v525 = vsub.s32 3, %v524
        %v526 = vrot.slane %v188, %v525
        %v529 = vmul.f32 %v517, %v522
        %v530 = vmul.f32 %v518, %v526
        %v531 = vadd.f32 %v398, %v529
        %v532 = vadd.f32 %v399, %v530
        %v533 = vadd.f32 %v531, %v532
        %534 = vst [vmem:[%s177] sm:$0x1] %v533
        %s535 = sand.u32 %s98, 1
        %s536 = scalar_lea.sflag [#allocation3], %s535
        %s537 = sand.u32 %s98, 1
        %s538 = scalar_lea.vmem [#allocation2], %s537
        // Predicated region
        $region33: #{tpu_custom_call.1} parent=31 // pred_check
          %p539 = pneg %p108
        $region34: #{tpu_custom_call.1} parent=31 // pred_check_branch
          %541 = sbr.rel (%p539) target = $region36
        $region35: #{tpu_custom_call.1} parent=31 // pred_region
          %s543 = ssub.s32 16, 16
          %544 = vsyncadd %s536, %s543
          %s545 = smul.addr %s17, 16
          %s546 = scalar_lea.hbm %s3, %s545
          %s548 = sshll.u32 %s538, 4
          %s549 = int_to_ptr.vmem [resolvable:$true] %s548
          %551 = dma.vmem_to_hbm [thread:$0]  %s549, 16, %s546, %s536
        $region36: #{tpu_custom_call.1} parent=31 // pred_fallthru
          _
      $region32: #{tpu_custom_call.1} parent=5 // pred_fallthru
        _
      %p552 = scmp.le.s32.totalorder 2, %s12
      // Predicated region
      $region37: #{tpu_custom_call.1} parent=5 // pred_check
        %p553 = pneg %p552
      $region38: #{tpu_custom_call.1} parent=5 // pred_check_branch
        %555 = sbr.rel (%p553) target = $region40
      $region39: #{tpu_custom_call.1} parent=5 // pred_region
        %s556 = ssub.s32 %s12, 2
        // Predicated region
        $region41: #{tpu_custom_call.1} parent=39 // pred_check
          %p557 = pneg %p114
        $region42: #{tpu_custom_call.1} parent=39 // pred_check_branch
          %559 = sbr.rel (%p557) target = $region44
        $region43: #{tpu_custom_call.1} parent=39 // pred_region
          %s560 = sand.u32 %s99, 1
          %s561 = scalar_lea.sflag [#allocation3], %s560
          %s562 = sand.u32 %s99, 1
          %s563 = scalar_lea.vmem [#allocation2], %s562
          %564 = dma.done %s561, 16
        $region44: #{tpu_custom_call.1} parent=39 // pred_fallthru
          _
      $region40: #{tpu_custom_call.1} parent=5 // pred_fallthru
        _
    $region6: #{tpu_custom_call.1} parent=1 // loop_footer
      %s16 = sadd.s32 1, %s12
    $region7: #{tpu_custom_call.1} parent=1 // loop_footer_branch
      %11 = sbr.rel target = $region3
    $region8: #{tpu_custom_call.1} parent=1 // loop_exit
      _
    %565 = vsyncpa [#allocation3], 1
    %s566 = scalar_lea.sflag [#allocation3], 1
    %567 = vsyncpa %s566, 1

</llo_original>
